<compile_context>
chip_gen: v6e
topology: v6e:2x2x1
jax: 0.10.0
libtpu: 0.0.40
codegen_flags: <defaults>
</compile_context>

<pallas_src>
import functools
import math

import jax
import jax.numpy as jnp
import numpy as np
from jax.experimental import pallas as pl
from jax.experimental.pallas import tpu as pltpu


def _round_up(n, m):
    return ((n + m - 1) // m) * m


# ---------------------------------------------------------------------------
# Pallas kernel
# ---------------------------------------------------------------------------
def cfsmn_kernel(seq_ref,       # SMEM  (Bp,)       int32  -- scalar prefetch
                 x_ref,         # VMEM  (Rblk, Dip) f32    (Rblk = Bblk*Tp rows)
                 wh_ref,        # VMEM  (Dip, Dhp)  bf16
                 bh_ref,        # VMEM  (1, Dhp)    f32
                 wm_ref,        # VMEM  (Dhp, Dmp)  bf16
                 f_ref,         # VMEM  (Kp, Dmp)   f32    FIR tap factors
                 out_ref,       # VMEM  (Rblk, Dmp) f32
                 *, Tp, Bblk, taps, skip_connect, upper_bound):
    g = pl.program_id(0)
    rows = Bblk * Tp

    x = x_ref[...]                                            # (R, Dip) f32

    # ---- hidden affine + ReLU (+ optional clip).  bf16 MXU, f32 accumulate.
    hid = jnp.dot(x.astype(jnp.bfloat16), wh_ref[...],
                  preferred_element_type=jnp.float32)
    hid = hid + bh_ref[...]
    hid = jnp.maximum(hid, 0.0)
    if upper_bound is not None:
        hid = jnp.minimum(hid, jnp.float32(upper_bound))
    # TODO(synk): nn.Dropout omitted (p=0.0 / eval mode -> identity).

    # ---- memory projection (no bias) + optional skip connection (f32 x).
    p = jnp.dot(hid.astype(jnp.bfloat16), wm_ref[...],
                preferred_element_type=jnp.float32)           # (R, Dmp)
    if skip_connect:
        p = p + x

    # ---- per-row local time index and sequence limit, built as (R,1) columns
    #      (lane-broadcast later); no full (R,Dm) iota/compare.
    row = jax.lax.broadcasted_iota(jnp.int32, (rows, 1), 0)
    t_local = row
    limit = jnp.full((rows, 1), seq_ref[g * Bblk], jnp.int32)
    for i in range(1, Bblk):                                  # Bblk is small, static
        in_b = row >= i * Tp
        t_local = jnp.where(in_b, row - i * Tp, t_local)
        limit = jnp.where(in_b, seq_ref[g * Bblk + i], limit)
    p = p * (t_local < limit).astype(jnp.float32)             # zero invalid frames

    # ---- depthwise FIR over time via XLU rolls + (R,1) edge masks:
    #      mem[t] = (1 + f_cur) * p[t] + sum_{d != 0} f_d * p[t + d],
    #      contributions outside [0, Tp) are zero.
    f_all = f_ref[...]                                        # (Kp, Dmp), one load
    cur_idx = taps.index(0)
    acc = f_all[cur_idx:cur_idx + 1, :] * p                   # (1 + f_cur) * p
    for idx, d in enumerate(taps):                            # static tap offsets
        if d == 0:
            continue                                          # folded into acc init
        if abs(d) >= Tp:
            continue                                          # always out of range
        f_row = f_all[idx:idx + 1, :]                         # (1, Dmp)
        shift = (-d) % rows                                   # shifted[t] = p[t + d]
        shifted = pltpu.roll(p, shift, 0)
        if d > 0:
            edge = (t_local < (Tp - d)).astype(jnp.float32)   # (R,1)
        else:
            edge = (t_local >= (-d)).astype(jnp.float32)
        acc = acc + (f_row * shifted) * edge

    out_ref[...] = acc


# ---------------------------------------------------------------------------
# Wrapper: padding, flattening, tap construction, pallas_call launch
# ---------------------------------------------------------------------------
def cfsmn_forward(inputs, seq_len, params, *, look_back, look_ahead,
                  stride_left, stride_right, skip_connect, upper_bound,
                  target_rows=512):
    B, T, Din = inputs.shape
    w_hid = params["w_hid"]            # (Din, Dh)
    b_hid = params["b_hid"]            # (Dh,)
    w_mem = params["w_mem"]            # (Dh, Dm)
    Dh = w_hid.shape[1]
    Dm = w_mem.shape[1]
    if skip_connect:
        assert Din == Dm

    # Lane/sublane-dense padded sizes.
    Tp = _round_up(T, 8)
    Dip = _round_up(Din, 128)
    Dhp = _round_up(Dh, 128)
    Dmp = _round_up(Dm, 128)
    if skip_connect:
        Dip = Dmp = max(Dip, Dmp)

    # Whole batch elements per grid step (MXU M = Bblk*Tp), bounded by a
    # conservative VMEM budget so it also fits v7x's 64 MiB with headroom.
    bytes_per_row = 4 * (2 * Dip + 2 * Dmp)        # double-buffered in/out blocks
    bytes_per_row += 4 * (Dip + Dhp + 3 * Dmp)     # live f32 intermediates
    budget = 24 * 1024 * 1024
    rows_cap = max(Tp, min(_round_up(target_rows, Tp),
                           budget // max(bytes_per_row, 1)))
    Bblk = int(max(1, min(B, rows_cap // Tp)))
    Bp = _round_up(B, Bblk)
    Rblk = Bblk * Tp

    # Padded / flattened operands (wrapper-side layout plumbing).
    x_p = jnp.pad(inputs.astype(jnp.float32),
                  ((0, Bp - B), (0, Tp - T), (0, Dip - Din)))
    x2 = x_p.reshape(Bp * Tp, Dip)
    seq_p = jnp.pad(seq_len.astype(jnp.int32), (0, Bp - B))
    wh = jnp.pad(w_hid, ((0, Dip - Din), (0, Dhp - Dh))).astype(jnp.bfloat16)
    bh = jnp.pad(b_hid, (0, Dhp - Dh)).reshape(1, Dhp).astype(jnp.float32)
    wm = jnp.pad(w_mem, ((0, Dhp - Dh), (0, Dmp - Dm))).astype(jnp.bfloat16)

    # Statically non-zero FIR taps: time offsets + per-channel factor rows.
    # The identity "+ p" of the memory block is folded into the cur row.
    lctx = look_back * stride_left
    taps = tuple([j * stride_left - lctx for j in range(look_back)]
                 + [0]
                 + [(j + 1) * stride_right for j in range(look_ahead)])
    f_act = jnp.concatenate(
        [params["left_factor"],
         params["cur_factor"] + 1.0,
         params["right_factor"]],
        axis=0).astype(jnp.float32)                 # rows match `taps` order
    Ka = f_act.shape[0]
    Kp = _round_up(Ka, 8)
    f_act = jnp.pad(f_act, ((0, Kp - Ka), (0, Dmp - Dm)))

    kernel = functools.partial(
        cfsmn_kernel, Tp=Tp, Bblk=Bblk, taps=taps,
        skip_connect=skip_connect, upper_bound=upper_bound)

    grid_spec = pltpu.PrefetchScalarGridSpec(
        num_scalar_prefetch=1,
        grid=(Bp // Bblk,),
        in_specs=[
            pl.BlockSpec((Rblk, Dip), lambda g, seq: (g, 0)),
            pl.BlockSpec((Dip, Dhp), lambda g, seq: (0, 0)),
            pl.BlockSpec((1, Dhp), lambda g, seq: (0, 0)),
            pl.BlockSpec((Dhp, Dmp), lambda g, seq: (0, 0)),
            pl.BlockSpec((Kp, Dmp), lambda g, seq: (0, 0)),
        ],
        out_specs=pl.BlockSpec((Rblk, Dmp), lambda g, seq: (g, 0)),
    )

    out2 = pl.pallas_call(
        kernel,
        grid_spec=grid_spec,
        out_shape=jax.ShapeDtypeStruct((Bp * Tp, Dmp), jnp.float32),
        compiler_params=pltpu.CompilerParams(
            dimension_semantics=("parallel",),
            vmem_limit_bytes=48 * 1024 * 1024),
    )(seq_p, x2, wh, bh, wm, f_act)

    return out2.reshape(Bp, Tp, Dmp)[:B, :T, :Dm]


# ---------------------------------------------------------------------------
# Pure-JAX reference (mirrors the PyTorch forward; uses the same bf16 MXU
# casts as the kernel so the comparison is tight).
# ---------------------------------------------------------------------------
def cfsmn_reference(inputs, seq_len, params, *, look_back, look_ahead,
                    stride_left, stride_right, skip_connect, upper_bound):
    B, T, Din = inputs.shape
    w_hid, b_hid, w_mem = params["w_hid"], params["b_hid"], params["w_mem"]
    Dm = w_mem.shape[1]

    hid = jnp.dot(inputs.astype(jnp.bfloat16), w_hid.astype(jnp.bfloat16),
                  preferred_element_type=jnp.float32) + b_hid
    hid = jax.nn.relu(hid)
    if upper_bound is not None:
        hid = jnp.minimum(hid, upper_bound)
    p = jnp.dot(hid.astype(jnp.bfloat16), w_mem.astype(jnp.bfloat16),
                preferred_element_type=jnp.float32)
    if skip_connect:
        p = p + inputs
    mask = (jnp.arange(T)[None, :] < seq_len[:, None]).astype(jnp.float32)
    p = p * mask[:, :, None]

    lctx = look_back * stride_left
    rctx = look_ahead * stride_right
    K = lctx + 1 + rctx
    f_mat = jnp.zeros((K, Dm), jnp.float32)
    f_mat = f_mat.at[0:lctx:stride_left].set(params["left_factor"])
    f_mat = f_mat.at[lctx].set(params["cur_factor"][0])
    f_mat = f_mat.at[lctx + stride_right::stride_right].set(params["right_factor"])

    ppad = jnp.pad(p, ((0, 0), (lctx, rctx), (0, 0)))
    mem = p
    for k in range(K):
        mem = mem + f_mat[k][None, None, :] * ppad[:, k:k + T, :]
    return mem


# ---------------------------------------------------------------------------
# Deterministic parameter init (shapes follow the nn.Module __init__)
# ---------------------------------------------------------------------------
def init_params(key, input_dim, hid_dim, mem_dim, look_back, look_ahead):
    ks = jax.random.split(key, 6)

    def xavier(k, shape, gain):
        fan_in, fan_out = shape[0], shape[1]
        bound = gain * math.sqrt(6.0 / (fan_in + fan_out))
        return jax.random.uniform(k, shape, jnp.float32, -bound, bound)

    def linear_w(k, fan_in, fan_out):
        bound = 1.0 / math.sqrt(fan_in)
        return jax.random.uniform(k, (fan_in, fan_out), jnp.float32, -bound, bound)

    return {
        "left_factor": xavier(ks[0], (look_back, mem_dim), 0.5),
        "cur_factor": xavier(ks[1], (1, mem_dim), 0.5),
        "right_factor": xavier(ks[2], (look_ahead, mem_dim), 0.5),
        "w_hid": linear_w(ks[3], input_dim, hid_dim),          # stored (Din, Dh)
        "b_hid": jax.random.uniform(ks[4], (hid_dim,), jnp.float32,
                                    -1.0 / math.sqrt(input_dim),
                                    1.0 / math.sqrt(input_dim)),
        "w_mem": linear_w(ks[5], hid_dim, mem_dim),            # stored (Dh, Dm)
    }


if __name__ == "__main__":
    # Small shapes consistent with the module's forward.
    B, T = 2, 16
    input_dim, hid_dim, mem_dim = 32, 32, 32
    look_back, look_ahead = 5, 5
    stride_left, stride_right = 1, 1
    skip_connect = True            # requires input_dim == mem_dim
    upper_bound = None

    key = jax.random.PRNGKey(0)
    k_x, k_p = jax.random.split(key)
    inputs = jax.random.normal(k_x, (B, T, input_dim), jnp.float32)
    seq_len = jnp.array([T, 11], dtype=jnp.int32)
    params = init_params(k_p, input_dim, hid_dim, mem_dim, look_back, look_ahead)

    cfg = dict(look_back=look_back, look_ahead=look_ahead,
               stride_left=stride_left, stride_right=stride_right,
               skip_connect=skip_connect, upper_bound=upper_bound)

    out = cfsmn_forward(inputs, seq_len, params, **cfg)
    out = jax.block_until_ready(out)

    ref = cfsmn_reference(inputs, seq_len, params, **cfg)
    np.testing.assert_allclose(np.asarray(out), np.asarray(ref),
                               rtol=5e-3, atol=5e-3)
    print("KERNEL_OK")
</pallas_src>

<mosaic_0001>
module attributes {stable_mosaic.version = 11 : i64} {
  func.func @cfsmn_kernel(%arg0: i32, %arg1: memref<2xi32, #tpu.memory_space<smem>>, %arg2: memref<32x128xf32, #tpu.memory_space<vmem>>, %arg3: memref<128x128xbf16, #tpu.memory_space<vmem>>, %arg4: memref<1x128xf32, #tpu.memory_space<vmem>>, %arg5: memref<128x128xbf16, #tpu.memory_space<vmem>>, %arg6: memref<16x128xf32, #tpu.memory_space<vmem>>, %arg7: memref<32x128xf32, #tpu.memory_space<vmem>>) attributes {dimension_semantics = [#tpu.dimension_semantics<parallel>], iteration_bounds = array<i64: 1>, scalar_prefetch = 1 : i64, scratch_operands = 0 : i64, tpu.core_type = #tpu.core_type<tc>, window_params = [{transform_indices = @transform_0, window_bounds = array<i64: 32, 128>}, {pipeline_mode = #tpu.pipeline_mode<synchronous>, transform_indices = @transform_1, window_bounds = array<i64: 128, 128>}, {pipeline_mode = #tpu.pipeline_mode<synchronous>, transform_indices = @transform_2, window_bounds = array<i64: 1, 128>}, {pipeline_mode = #tpu.pipeline_mode<synchronous>, transform_indices = @transform_3, window_bounds = array<i64: 128, 128>}, {pipeline_mode = #tpu.pipeline_mode<synchronous>, transform_indices = @transform_4, window_bounds = array<i64: 16, 128>}, {transform_indices = @transform_5, window_bounds = array<i64: 32, 128>}]} {
    %c0 = arith.constant 0 : index
    %c0_0 = arith.constant 0 : index
    %0 = vector.load %arg2[%c0, %c0_0] : memref<32x128xf32, #tpu.memory_space<vmem>>, vector<32x128xf32>
    %1 = arith.truncf %0 : vector<32x128xf32> to vector<32x128xbf16>
    %c0_1 = arith.constant 0 : index
    %c0_2 = arith.constant 0 : index
    %2 = vector.load %arg3[%c0_1, %c0_2] : memref<128x128xbf16, #tpu.memory_space<vmem>>, vector<128x128xbf16>
    %cst = arith.constant dense<0.000000e+00> : vector<32x128xf32>
    %3 = tpu.matmul %1, %2, %cst {dimension_numbers = #tpu.dot_dimension_numbers<[1], [0], [0], [1], [0, 0, 1, 1], [], []>} : vector<32x128xbf16>, vector<128x128xbf16>, vector<32x128xf32> -> vector<32x128xf32>
    %c0_3 = arith.constant 0 : index
    %c0_4 = arith.constant 0 : index
    %4 = vector.load %arg4[%c0_3, %c0_4] : memref<1x128xf32, #tpu.memory_space<vmem>>, vector<1x128xf32>
    %5 = vector.broadcast %4 : vector<1x128xf32> to vector<32x128xf32>
    %6 = arith.addf %3, %5 : vector<32x128xf32>
    %cst_5 = arith.constant 0.000000e+00 : f32
    %7 = vector.broadcast %cst_5 : f32 to vector<32x128xf32>
    %8 = arith.maximumf %6, %7 : vector<32x128xf32>
    %9 = arith.truncf %8 : vector<32x128xf32> to vector<32x128xbf16>
    %c0_6 = arith.constant 0 : index
    %c0_7 = arith.constant 0 : index
    %10 = vector.load %arg5[%c0_6, %c0_7] : memref<128x128xbf16, #tpu.memory_space<vmem>>, vector<128x128xbf16>
    %cst_8 = arith.constant dense<0.000000e+00> : vector<32x128xf32>
    %11 = tpu.matmul %9, %10, %cst_8 {dimension_numbers = #tpu.dot_dimension_numbers<[1], [0], [0], [1], [0, 0, 1, 1], [], []>} : vector<32x128xbf16>, vector<128x128xbf16>, vector<32x128xf32> -> vector<32x128xf32>
    %12 = arith.addf %11, %0 : vector<32x128xf32>
    %13 = tpu.iota {dimensions = array<i32: 0>} : vector<32x1xi32>
    %c2_i32 = arith.constant 2 : i32
    %14 = arith.muli %arg0, %c2_i32 : i32
    %15 = arith.index_cast %14 : i32 to index
    %16 = memref.load %arg1[%15] : memref<2xi32, #tpu.memory_space<smem>>
    %17 = vector.broadcast %16 : i32 to vector<32x1xi32>
    %c16_i32 = arith.constant 16 : i32
    %18 = vector.broadcast %c16_i32 : i32 to vector<32x1xi32>
    %19 = arith.cmpi sge, %13, %18 : vector<32x1xi32>
    %c16_i32_9 = arith.constant 16 : i32
    %20 = vector.broadcast %c16_i32_9 : i32 to vector<32x1xi32>
    %21 = arith.subi %13, %20 : vector<32x1xi32>
    %22 = arith.select %19, %21, %13 : vector<32x1xi1>, vector<32x1xi32>
    %c2_i32_10 = arith.constant 2 : i32
    %23 = arith.muli %arg0, %c2_i32_10 : i32
    %c1_i32 = arith.constant 1 : i32
    %24 = arith.addi %23, %c1_i32 : i32
    %25 = arith.index_cast %24 : i32 to index
    %26 = memref.load %arg1[%25] : memref<2xi32, #tpu.memory_space<smem>>
    %27 = vector.broadcast %26 : i32 to vector<32x1xi32>
    %28 = arith.select %19, %27, %17 : vector<32x1xi1>, vector<32x1xi32>
    %29 = arith.cmpi slt, %22, %28 : vector<32x1xi32>
    %30 = arith.extui %29 : vector<32x1xi1> to vector<32x1xi32>
    %31 = arith.sitofp %30 : vector<32x1xi32> to vector<32x1xf32>
    %32 = vector.broadcast %31 : vector<32x1xf32> to vector<32x128xf32>
    %33 = arith.mulf %12, %32 : vector<32x128xf32>
    %c0_11 = arith.constant 0 : index
    %c0_12 = arith.constant 0 : index
    %34 = vector.load %arg6[%c0_11, %c0_12] : memref<16x128xf32, #tpu.memory_space<vmem>>, vector<16x128xf32>
    %35 = vector.extract_strided_slice %34 {offsets = [5, 0], sizes = [1, 128], strides = [1, 1]} : vector<16x128xf32> to vector<1x128xf32>
    %36 = vector.broadcast %35 : vector<1x128xf32> to vector<32x128xf32>
    %37 = arith.mulf %36, %33 : vector<32x128xf32>
    %38 = vector.extract_strided_slice %34 {offsets = [0, 0], sizes = [1, 128], strides = [1, 1]} : vector<16x128xf32> to vector<1x128xf32>
    %c5_i32 = arith.constant 5 : i32
    %39 = tpu.dynamic_rotate %33 by %c5_i32 dim 0 : vector<32x128xf32>, i32 -> vector<32x128xf32>
    %c5_i32_13 = arith.constant 5 : i32
    %40 = vector.broadcast %c5_i32_13 : i32 to vector<32x1xi32>
    %41 = arith.cmpi sge, %22, %40 : vector<32x1xi32>
    %42 = arith.extui %41 : vector<32x1xi1> to vector<32x1xi32>
    %43 = arith.sitofp %42 : vector<32x1xi32> to vector<32x1xf32>
    %44 = vector.broadcast %38 : vector<1x128xf32> to vector<32x128xf32>
    %45 = arith.mulf %44, %39 : vector<32x128xf32>
    %46 = vector.broadcast %43 : vector<32x1xf32> to vector<32x128xf32>
    %47 = arith.mulf %45, %46 : vector<32x128xf32>
    %48 = arith.addf %37, %47 : vector<32x128xf32>
    %49 = vector.extract_strided_slice %34 {offsets = [1, 0], sizes = [1, 128], strides = [1, 1]} : vector<16x128xf32> to vector<1x128xf32>
    %c4_i32 = arith.constant 4 : i32
    %50 = tpu.dynamic_rotate %33 by %c4_i32 dim 0 : vector<32x128xf32>, i32 -> vector<32x128xf32>
    %c4_i32_14 = arith.constant 4 : i32
    %51 = vector.broadcast %c4_i32_14 : i32 to vector<32x1xi32>
    %52 = arith.cmpi sge, %22, %51 : vector<32x1xi32>
    %53 = arith.extui %52 : vector<32x1xi1> to vector<32x1xi32>
    %54 = arith.sitofp %53 : vector<32x1xi32> to vector<32x1xf32>
    %55 = vector.broadcast %49 : vector<1x128xf32> to vector<32x128xf32>
    %56 = arith.mulf %55, %50 : vector<32x128xf32>
    %57 = vector.broadcast %54 : vector<32x1xf32> to vector<32x128xf32>
    %58 = arith.mulf %56, %57 : vector<32x128xf32>
    %59 = arith.addf %48, %58 : vector<32x128xf32>
    %60 = vector.extract_strided_slice %34 {offsets = [2, 0], sizes = [1, 128], strides = [1, 1]} : vector<16x128xf32> to vector<1x128xf32>
    %c3_i32 = arith.constant 3 : i32
    %61 = tpu.dynamic_rotate %33 by %c3_i32 dim 0 : vector<32x128xf32>, i32 -> vector<32x128xf32>
    %c3_i32_15 = arith.constant 3 : i32
    %62 = vector.broadcast %c3_i32_15 : i32 to vector<32x1xi32>
    %63 = arith.cmpi sge, %22, %62 : vector<32x1xi32>
    %64 = arith.extui %63 : vector<32x1xi1> to vector<32x1xi32>
    %65 = arith.sitofp %64 : vector<32x1xi32> to vector<32x1xf32>
    %66 = vector.broadcast %60 : vector<1x128xf32> to vector<32x128xf32>
    %67 = arith.mulf %66, %61 : vector<32x128xf32>
    %68 = vector.broadcast %65 : vector<32x1xf32> to vector<32x128xf32>
    %69 = arith.mulf %67, %68 : vector<32x128xf32>
    %70 = arith.addf %59, %69 : vector<32x128xf32>
    %71 = vector.extract_strided_slice %34 {offsets = [3, 0], sizes = [1, 128], strides = [1, 1]} : vector<16x128xf32> to vector<1x128xf32>
    %c2_i32_16 = arith.constant 2 : i32
    %72 = tpu.dynamic_rotate %33 by %c2_i32_16 dim 0 : vector<32x128xf32>, i32 -> vector<32x128xf32>
    %c2_i32_17 = arith.constant 2 : i32
    %73 = vector.broadcast %c2_i32_17 : i32 to vector<32x1xi32>
    %74 = arith.cmpi sge, %22, %73 : vector<32x1xi32>
    %75 = arith.extui %74 : vector<32x1xi1> to vector<32x1xi32>
    %76 = arith.sitofp %75 : vector<32x1xi32> to vector<32x1xf32>
    %77 = vector.broadcast %71 : vector<1x128xf32> to vector<32x128xf32>
    %78 = arith.mulf %77, %72 : vector<32x128xf32>
    %79 = vector.broadcast %76 : vector<32x1xf32> to vector<32x128xf32>
    %80 = arith.mulf %78, %79 : vector<32x128xf32>
    %81 = arith.addf %70, %80 : vector<32x128xf32>
    %82 = vector.extract_strided_slice %34 {offsets = [4, 0], sizes = [1, 128], strides = [1, 1]} : vector<16x128xf32> to vector<1x128xf32>
    %c1_i32_18 = arith.constant 1 : i32
    %83 = tpu.dynamic_rotate %33 by %c1_i32_18 dim 0 : vector<32x128xf32>, i32 -> vector<32x128xf32>
    %c1_i32_19 = arith.constant 1 : i32
    %84 = vector.broadcast %c1_i32_19 : i32 to vector<32x1xi32>
    %85 = arith.cmpi sge, %22, %84 : vector<32x1xi32>
    %86 = arith.extui %85 : vector<32x1xi1> to vector<32x1xi32>
    %87 = arith.sitofp %86 : vector<32x1xi32> to vector<32x1xf32>
    %88 = vector.broadcast %82 : vector<1x128xf32> to vector<32x128xf32>
    %89 = arith.mulf %88, %83 : vector<32x128xf32>
    %90 = vector.broadcast %87 : vector<32x1xf32> to vector<32x128xf32>
    %91 = arith.mulf %89, %90 : vector<32x128xf32>
    %92 = arith.addf %81, %91 : vector<32x128xf32>
    %93 = vector.extract_strided_slice %34 {offsets = [6, 0], sizes = [1, 128], strides = [1, 1]} : vector<16x128xf32> to vector<1x128xf32>
    %c31_i32 = arith.constant 31 : i32
    %94 = tpu.dynamic_rotate %33 by %c31_i32 dim 0 : vector<32x128xf32>, i32 -> vector<32x128xf32>
    %c15_i32 = arith.constant 15 : i32
    %95 = vector.broadcast %c15_i32 : i32 to vector<32x1xi32>
    %96 = arith.cmpi slt, %22, %95 : vector<32x1xi32>
    %97 = arith.extui %96 : vector<32x1xi1> to vector<32x1xi32>
    %98 = arith.sitofp %97 : vector<32x1xi32> to vector<32x1xf32>
    %99 = vector.broadcast %93 : vector<1x128xf32> to vector<32x128xf32>
    %100 = arith.mulf %99, %94 : vector<32x128xf32>
    %101 = vector.broadcast %98 : vector<32x1xf32> to vector<32x128xf32>
    %102 = arith.mulf %100, %101 : vector<32x128xf32>
    %103 = arith.addf %92, %102 : vector<32x128xf32>
    %104 = vector.extract_strided_slice %34 {offsets = [7, 0], sizes = [1, 128], strides = [1, 1]} : vector<16x128xf32> to vector<1x128xf32>
    %c30_i32 = arith.constant 30 : i32
    %105 = tpu.dynamic_rotate %33 by %c30_i32 dim 0 : vector<32x128xf32>, i32 -> vector<32x128xf32>
    %c14_i32 = arith.constant 14 : i32
    %106 = vector.broadcast %c14_i32 : i32 to vector<32x1xi32>
    %107 = arith.cmpi slt, %22, %106 : vector<32x1xi32>
    %108 = arith.extui %107 : vector<32x1xi1> to vector<32x1xi32>
    %109 = arith.sitofp %108 : vector<32x1xi32> to vector<32x1xf32>
    %110 = vector.broadcast %104 : vector<1x128xf32> to vector<32x128xf32>
    %111 = arith.mulf %110, %105 : vector<32x128xf32>
    %112 = vector.broadcast %109 : vector<32x1xf32> to vector<32x128xf32>
    %113 = arith.mulf %111, %112 : vector<32x128xf32>
    %114 = arith.addf %103, %113 : vector<32x128xf32>
    %115 = vector.extract_strided_slice %34 {offsets = [8, 0], sizes = [1, 128], strides = [1, 1]} : vector<16x128xf32> to vector<1x128xf32>
    %c29_i32 = arith.constant 29 : i32
    %116 = tpu.dynamic_rotate %33 by %c29_i32 dim 0 : vector<32x128xf32>, i32 -> vector<32x128xf32>
    %c13_i32 = arith.constant 13 : i32
    %117 = vector.broadcast %c13_i32 : i32 to vector<32x1xi32>
    %118 = arith.cmpi slt, %22, %117 : vector<32x1xi32>
    %119 = arith.extui %118 : vector<32x1xi1> to vector<32x1xi32>
    %120 = arith.sitofp %119 : vector<32x1xi32> to vector<32x1xf32>
    %121 = vector.broadcast %115 : vector<1x128xf32> to vector<32x128xf32>
    %122 = arith.mulf %121, %116 : vector<32x128xf32>
    %123 = vector.broadcast %120 : vector<32x1xf32> to vector<32x128xf32>
    %124 = arith.mulf %122, %123 : vector<32x128xf32>
    %125 = arith.addf %114, %124 : vector<32x128xf32>
    %126 = vector.extract_strided_slice %34 {offsets = [9, 0], sizes = [1, 128], strides = [1, 1]} : vector<16x128xf32> to vector<1x128xf32>
    %c28_i32 = arith.constant 28 : i32
    %127 = tpu.dynamic_rotate %33 by %c28_i32 dim 0 : vector<32x128xf32>, i32 -> vector<32x128xf32>
    %c12_i32 = arith.constant 12 : i32
    %128 = vector.broadcast %c12_i32 : i32 to vector<32x1xi32>
    %129 = arith.cmpi slt, %22, %128 : vector<32x1xi32>
    %130 = arith.extui %129 : vector<32x1xi1> to vector<32x1xi32>
    %131 = arith.sitofp %130 : vector<32x1xi32> to vector<32x1xf32>
    %132 = vector.broadcast %126 : vector<1x128xf32> to vector<32x128xf32>
    %133 = arith.mulf %132, %127 : vector<32x128xf32>
    %134 = vector.broadcast %131 : vector<32x1xf32> to vector<32x128xf32>
    %135 = arith.mulf %133, %134 : vector<32x128xf32>
    %136 = arith.addf %125, %135 : vector<32x128xf32>
    %137 = vector.extract_strided_slice %34 {offsets = [10, 0], sizes = [1, 128], strides = [1, 1]} : vector<16x128xf32> to vector<1x128xf32>
    %c27_i32 = arith.constant 27 : i32
    %138 = tpu.dynamic_rotate %33 by %c27_i32 dim 0 : vector<32x128xf32>, i32 -> vector<32x128xf32>
    %c11_i32 = arith.constant 11 : i32
    %139 = vector.broadcast %c11_i32 : i32 to vector<32x1xi32>
    %140 = arith.cmpi slt, %22, %139 : vector<32x1xi32>
    %141 = arith.extui %140 : vector<32x1xi1> to vector<32x1xi32>
    %142 = arith.sitofp %141 : vector<32x1xi32> to vector<32x1xf32>
    %143 = vector.broadcast %137 : vector<1x128xf32> to vector<32x128xf32>
    %144 = arith.mulf %143, %138 : vector<32x128xf32>
    %145 = vector.broadcast %142 : vector<32x1xf32> to vector<32x128xf32>
    %146 = arith.mulf %144, %145 : vector<32x128xf32>
    %147 = arith.addf %136, %146 : vector<32x128xf32>
    %c0_20 = arith.constant 0 : index
    %c0_21 = arith.constant 0 : index
    %148 = vector.load %arg7[%c0_20, %c0_21] : memref<32x128xf32, #tpu.memory_space<vmem>>, vector<32x128xf32>
    tpu.vector_store %arg7[%c0_20, %c0_21], %147 {strides = array<i32>} : memref<32x128xf32, #tpu.memory_space<vmem>>, vector<32x128xf32>,
    return
  }
  func.func @transform_0(%arg0: i32, %arg1: memref<2xi32, #tpu.memory_space<smem>>) -> (i32, i32) {
    %c0_i32 = arith.constant 0 : i32
    %c0_i32_0 = arith.constant 0 : i32
    return %arg0, %c0_i32 : i32, i32
  }
  func.func @transform_1(%arg0: i32, %arg1: memref<2xi32, #tpu.memory_space<smem>>) -> (i32, i32) {
    %c0_i32 = arith.constant 0 : i32
    %c0_i32_0 = arith.constant 0 : i32
    %c0_i32_1 = arith.constant 0 : i32
    return %c0_i32, %c0_i32_0 : i32, i32
  }
  func.func @transform_2(%arg0: i32, %arg1: memref<2xi32, #tpu.memory_space<smem>>) -> (i32, i32) {
    %c0_i32 = arith.constant 0 : i32
    %c0_i32_0 = arith.constant 0 : i32
    %c0_i32_1 = arith.constant 0 : i32
    return %c0_i32, %c0_i32_0 : i32, i32
  }
  func.func @transform_3(%arg0: i32, %arg1: memref<2xi32, #tpu.memory_space<smem>>) -> (i32, i32) {
    %c0_i32 = arith.constant 0 : i32
    %c0_i32_0 = arith.constant 0 : i32
    %c0_i32_1 = arith.constant 0 : i32
    return %c0_i32, %c0_i32_0 : i32, i32
  }
  func.func @transform_4(%arg0: i32, %arg1: memref<2xi32, #tpu.memory_space<smem>>) -> (i32, i32) {
    %c0_i32 = arith.constant 0 : i32
    %c0_i32_0 = arith.constant 0 : i32
    %c0_i32_1 = arith.constant 0 : i32
    return %c0_i32, %c0_i32_0 : i32, i32
  }
  func.func @transform_5(%arg0: i32, %arg1: memref<2xi32, #tpu.memory_space<smem>>) -> (i32, i32) {
    %c0_i32 = arith.constant 0 : i32
    %c0_i32_0 = arith.constant 0 : i32
    return %arg0, %c0_i32 : i32, i32
  }
}

</mosaic_0001>

<llo_original>
// kernel: tpu_custom_call.1
$region0: #{tpu_custom_call.1}
  #allocation0 [shape = 'u32[]', space=smem, size = 0x4, offset = 0x4, fixed_abs, tag = 'smem constant byte address 0x4 - core index']
  #allocation1 [shape = 'u32[144,128]{1,0:T(1,128)}', space=vmem, size = 0x12000, scoped, tag = 'internal scratch']
  #allocation2 [shape = 's32[1]{0}', space=sflag, size = 0x4, scoped, tag = 'scoped memory for tpu_custom_call.1']
  #allocation3 [shape = 'u8[512]{0}', space=smem, size = 0x200, scoped, tag = 'prefetched SMEM operand 0']
  %s0 = inlined_call_operand.hbm [shape: s32[2], index: 0, kind: input, shape index: {}]
  %s1 = inlined_call_operand.hbm [shape: f32[32,128], index: 1, kind: input, shape index: {}]
  %s2 = inlined_call_operand.hbm [shape: bf16[128,128], index: 2, kind: input, shape index: {}]
  %s3 = inlined_call_operand.vmem [shape: f32[1,128], index: 3, kind: input, shape index: {}]
  %s4 = inlined_call_operand.hbm [shape: bf16[128,128], index: 4, kind: input, shape index: {}]
  %s5 = inlined_call_operand.hbm [shape: f32[16,128], index: 5, kind: input, shape index: {}]
  %s6 = inlined_call_operand.hbm [shape: f32[32,128], index: 6, kind: output, shape index: {}]
  %s7 = sld [smem:[#allocation0]]
  $region46: #{tpu_custom_call.1} parent=0
    _
  %s9 = ssub.s32 1, %s7
  %s10 = scalar_select 0, %s9, %s7
  %12 = dma.hbm_to_smem %s0, 16, [#allocation3], [#allocation2]
  %13 = dma.done [#allocation2], 16
  %14 = sfence
  $region1: #{tpu_custom_call.1} parent=0
    #allocation4 [shape = 'u8[16384]{0}', space=vmem, size = 0x4000, scoped, tag = 'input window, operand 1, single buffered']
    #allocation5 [shape = 's32[1]{0}', space=sflag, size = 0x4, scoped, tag = 'scoped memory for tpu_custom_call.1']
    #allocation6 [shape = 's32[1]{0}', space=sflag, size = 0x4, scoped, tag = 'scoped memory for tpu_custom_call.1']
    #allocation7 [shape = 'u8[32768]{0}', space=vmem, size = 0x8000, scoped, tag = 'input window, operand 2, single buffered']
    #allocation8 [shape = 's32[1]{0}', space=sflag, size = 0x4, scoped, tag = 'scoped memory for tpu_custom_call.1']
    #allocation9 [shape = 'u8[32768]{0}', space=vmem, size = 0x8000, scoped, tag = 'input window, operand 4, single buffered']
    #allocation10 [shape = 'u8[8192]{0}', space=vmem, size = 0x2000, scoped, tag = 'input window, operand 5, single buffered']
    #allocation11 [shape = 's32[1]{0}', space=sflag, size = 0x4, scoped, tag = 'scoped memory for tpu_custom_call.1']
    #allocation12 [shape = 'u8[16384]{0}', space=vmem, size = 0x4000, scoped, tag = 'output window, operand 0, single buffered']
    %15 = vsyncpa [#allocation5], 0
    %16 = vsyncpa [#allocation8], 0
    %17 = vsyncpa [#allocation11], 0
    %18 = vsyncpa [#allocation6], 0
    // Predicated region
    $region2: #{tpu_custom_call.1} parent=1 // pred_check
      _
    $region3: #{tpu_custom_call.1} parent=1 // pred_check_branch
      %20 = sbr.rel (0) target = $region5
    $region4: #{tpu_custom_call.1} parent=1 // pred_region
      %s22 = ssub.s32 512, 512
      %23 = vsyncadd [#allocation5], %s22
      %s24 = sshll.u32 [#allocation4], 4
      %s25 = int_to_ptr.vmem [resolvable:$true] %s24
      %30 = dma.hbm_to_vmem [thread:$0]  %s1, 512, %s25, [#allocation5], 128, 128, 8
    $region5: #{tpu_custom_call.1} parent=1 // pred_fallthru
      _
    // Predicated region
    $region6: #{tpu_custom_call.1} parent=1 // pred_check
      _
    $region7: #{tpu_custom_call.1} parent=1 // pred_check_branch
      %32 = sbr.rel (0) target = $region9
    $region8: #{tpu_custom_call.1} parent=1 // pred_region
      %s34 = ssub.s32 1024, 1024
      %35 = vsyncadd [#allocation8], %s34
      %s36 = sshll.u32 [#allocation7], 4
      %s37 = int_to_ptr.vmem [resolvable:$true] %s36
      %42 = dma.hbm_to_vmem [thread:$0]  %s2, 1024, %s37, [#allocation8], 64, 64, 4
    $region9: #{tpu_custom_call.1} parent=1 // pred_fallthru
      _
    // Predicated region
    $region10: #{tpu_custom_call.1} parent=1 // pred_check
      _
    $region11: #{tpu_custom_call.1} parent=1 // pred_check_branch
      %44 = sbr.rel (0) target = $region13
    $region12: #{tpu_custom_call.1} parent=1 // pred_region
      _
    $region13: #{tpu_custom_call.1} parent=1 // pred_fallthru
      _
    // Predicated region
    $region14: #{tpu_custom_call.1} parent=1 // pred_check
      _
    $region15: #{tpu_custom_call.1} parent=1 // pred_check_branch
      %46 = sbr.rel (0) target = $region17
    $region16: #{tpu_custom_call.1} parent=1 // pred_region
      %s48 = ssub.s32 1024, 1024
      %49 = vsyncadd [#allocation8], %s48
      %s50 = sshll.u32 [#allocation9], 4
      %s51 = int_to_ptr.vmem [resolvable:$true] %s50
      %56 = dma.hbm_to_vmem [thread:$0]  %s4, 1024, %s51, [#allocation8], 64, 64, 4
    $region17: #{tpu_custom_call.1} parent=1 // pred_fallthru
      _
    // Predicated region
    $region18: #{tpu_custom_call.1} parent=1 // pred_check
      _
    $region19: #{tpu_custom_call.1} parent=1 // pred_check_branch
      %58 = sbr.rel (0) target = $region21
    $region20: #{tpu_custom_call.1} parent=1 // pred_region
      %s60 = ssub.s32 256, 256
      %61 = vsyncadd [#allocation11], %s60
      %s62 = sshll.u32 [#allocation10], 4
      %s63 = int_to_ptr.vmem [resolvable:$true] %s62
      %68 = dma.hbm_to_vmem [thread:$0]  %s5, 256, %s63, [#allocation11], 128, 128, 8
    $region21: #{tpu_custom_call.1} parent=1 // pred_fallthru
      _
    // Predicated region
    $region22: #{tpu_custom_call.1} parent=1 // pred_check
      _
    $region23: #{tpu_custom_call.1} parent=1 // pred_check_branch
      %70 = sbr.rel (0) target = $region25
    $region24: #{tpu_custom_call.1} parent=1 // pred_region
      %71 = dma.done [#allocation5], 512
    $region25: #{tpu_custom_call.1} parent=1 // pred_fallthru
      _
    // Predicated region
    $region26: #{tpu_custom_call.1} parent=1 // pred_check
      _
    $region27: #{tpu_custom_call.1} parent=1 // pred_check_branch
      %73 = sbr.rel (0) target = $region29
    $region28: #{tpu_custom_call.1} parent=1 // pred_region
      %74 = dma.done [#allocation8], 1024
    $region29: #{tpu_custom_call.1} parent=1 // pred_fallthru
      _
    // Predicated region
    $region30: #{tpu_custom_call.1} parent=1 // pred_check
      _
    $region31: #{tpu_custom_call.1} parent=1 // pred_check_branch
      %76 = sbr.rel (0) target = $region33
    $region32: #{tpu_custom_call.1} parent=1 // pred_region
      %77 = dma.done [#allocation8], 1024
    $region33: #{tpu_custom_call.1} parent=1 // pred_fallthru
      _
    // Predicated region
    $region34: #{tpu_custom_call.1} parent=1 // pred_check
      _
    $region35: #{tpu_custom_call.1} parent=1 // pred_check_branch
      %79 = sbr.rel (0) target = $region37
    $region36: #{tpu_custom_call.1} parent=1 // pred_region
      %80 = dma.done [#allocation11], 256
    $region37: #{tpu_custom_call.1} parent=1 // pred_fallthru
      _
    %v82 = vld [vmem:[#allocation4] sm:$0xff]
    %v83 = vld [vmem:[#allocation4 + $0x8] sm:$0xff]
    %v84 = vld [vmem:[#allocation4 + $0x10] sm:$0xff]
    %v85 = vld [vmem:[#allocation4 + $0x18] sm:$0xff]
    %v86 = vpack.c.bf16 %v83, %v82
    %v87 = vpack.c.bf16 %v85, %v84
    %v88 = vld [vmem:[#allocation7] sm:$0xf]
    %v89 = vld [vmem:[#allocation7 + $0x4] sm:$0xf]
    %v90 = vld [vmem:[#allocation7 + $0x8] sm:$0xf]
    %v91 = vld [vmem:[#allocation7 + $0xc] sm:$0xf]
    %v92 = vld [vmem:[#allocation7 + $0x10] sm:$0xf]
    %v93 = vld [vmem:[#allocation7 + $0x14] sm:$0xf]
    %v94 = vld [vmem:[#allocation7 + $0x18] sm:$0xf]
    %v95 = vld [vmem:[#allocation7 + $0x1c] sm:$0xf]
    %v96 = vld [vmem:[#allocation7 + $0x20] sm:$0xf]
    %v97 = vld [vmem:[#allocation7 + $0x24] sm:$0xf]
    %v98 = vld [vmem:[#allocation7 + $0x28] sm:$0xf]
    %v99 = vld [vmem:[#allocation7 + $0x2c] sm:$0xf]
    %v100 = vld [vmem:[#allocation7 + $0x30] sm:$0xf]
    %v101 = vld [vmem:[#allocation7 + $0x34] sm:$0xf]
    %v102 = vld [vmem:[#allocation7 + $0x38] sm:$0xf]
    %v103 = vld [vmem:[#allocation7 + $0x3c] sm:$0xf]
    %v104 = vld [vmem:[%s3] sm:$0x1]
    %v106 = vlaneseq
    %v107 = vshrl.u32 %v106, 7
    %v108 = vsub.s32 0, %v107
    %v109 = vrot.slane %v104, %v108
    %v127 = vunpack.c.l.b16 %v88
    %v128 = vunpack.c.l.b16 %v89
    %v129 = vunpack.c.l.b16 %v90
    %v130 = vunpack.c.l.b16 %v91
    %v131 = vunpack.c.l.b16 %v92
    %v132 = vunpack.c.l.b16 %v93
    %v133 = vunpack.c.l.b16 %v94
    %v134 = vunpack.c.l.b16 %v95
    %v135 = vunpack.c.l.b16 %v96
    %v136 = vunpack.c.l.b16 %v97
    %v137 = vunpack.c.l.b16 %v98
    %v138 = vunpack.c.l.b16 %v99
    %v139 = vunpack.c.l.b16 %v100
    %v140 = vunpack.c.l.b16 %v101
    %v141 = vunpack.c.l.b16 %v102
    %v142 = vunpack.c.l.b16 %v103
    %v143 = vpack.c.b16 %v128, %v127
    %v144 = vpack.c.b16 %v130, %v129
    %v145 = vpack.c.b16 %v132, %v131
    %v146 = vpack.c.b16 %v134, %v133
    %v147 = vpack.c.b16 %v136, %v135
    %v148 = vpack.c.b16 %v138, %v137
    %v149 = vpack.c.b16 %v140, %v139
    %v150 = vpack.c.b16 %v142, %v141
    %159 = vmatprep.subr.bf16.mxu0 0
    %160 = vmatpush1.bf16.msra.mxu0 %v150
    %161 = vmatprep.subr.bf16.mxu0 0
    %162 = vmatpush1.bf16.msra.mxu0 %v149
    %163 = vmatprep.subr.bf16.mxu0 0
    %164 = vmatpush1.bf16.msra.mxu0 %v148
    %165 = vmatprep.subr.bf16.mxu0 0
    %166 = vmatpush1.bf16.msra.mxu0 %v147
    %167 = vmatprep.subr.bf16.mxu0 0
    %168 = vmatpush1.bf16.msra.mxu0 %v146
    %169 = vmatprep.subr.bf16.mxu0 0
    %170 = vmatpush1.bf16.msra.mxu0 %v145
    %171 = vmatprep.subr.bf16.mxu0 0
    %172 = vmatpush1.bf16.msra.mxu0 %v144
    %173 = vmatprep.subr.bf16.mxu0 0
    %174 = vmatpush1.bf16.msra.mxu0 %v143
    %175 = vmatprep.subr.bf16.mxu0 0
    %176 = vmatpush2.bf16.msra.mxu0 0
    %177 = vmatprep.subr.bf16.mxu0 0
    %178 = vmatpush2.bf16.msra.mxu0 0
    %179 = vmatprep.subr.bf16.mxu0 0
    %180 = vmatpush2.bf16.msra.mxu0 0
    %181 = vmatprep.subr.bf16.mxu0 0
    %182 = vmatpush2.bf16.msra.mxu0 0
    %183 = vmatprep.subr.bf16.mxu0 0
    %184 = vmatpush2.bf16.msra.mxu0 0
    %185 = vmatprep.subr.bf16.mxu0 0
    %186 = vmatpush2.bf16.msra.mxu0 0
    %187 = vmatprep.subr.bf16.mxu0 0
    %188 = vmatpush2.bf16.msra.mxu0 0
    %189 = vmatprep.subr.bf16.mxu0 0
    %190 = vmatpush2.bf16.msra.mxu0 0
    %191 = vmatprep.mubr.bf16.mxu0 0
    %192 = vmatmul.mubr.bf16.gmra.mxu0 %v86
    %v193 = vpop.f32.mrf.mxu0
    %v194 = vadd.f32 %v109, %v193
    %v195 = vpop.f32.mrf.mxu0
    %v196 = vpop.f32.mrf.mxu0
    %v197 = vadd.f32 %v109, %v196
    %v198 = vpop.f32.mrf.mxu0
    %199 = vmatprep.mubr.bf16.mxu0 0
    %200 = vmatmul.mubr.bf16.gmra.mxu0 %v87
    %v201 = vpop.f32.mrf.mxu0
    %v202 = vadd.f32 %v109, %v201
    %v203 = vpop.f32.mrf.mxu0
    %v204 = vpop.f32.mrf.mxu0
    %v205 = vadd.f32 %v109, %v204
    %v206 = vpop.f32.mrf.mxu0
    %207 = vdwg.mxu0
    %v208 = vmax.f32 %v194, 0.0
    %v209 = vmax.f32 %v197, 0.0
    %v210 = vmax.f32 %v202, 0.0
    %v211 = vmax.f32 %v205, 0.0
    %v212 = vpack.c.bf16 %v209, %v208
    %v213 = vpack.c.bf16 %v211, %v210
    %v214 = vld [vmem:[#allocation9] sm:$0xf]
    %v215 = vld [vmem:[#allocation9 + $0x4] sm:$0xf]
    %v216 = vld [vmem:[#allocation9 + $0x8] sm:$0xf]
    %v217 = vld [vmem:[#allocation9 + $0xc] sm:$0xf]
    %v218 = vld [vmem:[#allocation9 + $0x10] sm:$0xf]
    %v219 = vld [vmem:[#allocation9 + $0x14] sm:$0xf]
    %v220 = vld [vmem:[#allocation9 + $0x18] sm:$0xf]
    %v221 = vld [vmem:[#allocation9 + $0x1c] sm:$0xf]
    %v222 = vld [vmem:[#allocation9 + $0x20] sm:$0xf]
    %v223 = vld [vmem:[#allocation9 + $0x24] sm:$0xf]
    %v224 = vld [vmem:[#allocation9 + $0x28] sm:$0xf]
    %v225 = vld [vmem:[#allocation9 + $0x2c] sm:$0xf]
    %v226 = vld [vmem:[#allocation9 + $0x30] sm:$0xf]
    %v227 = vld [vmem:[#allocation9 + $0x34] sm:$0xf]
    %v228 = vld [vmem:[#allocation9 + $0x38] sm:$0xf]
    %v229 = vld [vmem:[#allocation9 + $0x3c] sm:$0xf]
    %v246 = vunpack.c.l.b16 %v214
    %v247 = vunpack.c.l.b16 %v215
    %v248 = vunpack.c.l.b16 %v216
    %v249 = vunpack.c.l.b16 %v217
    %v250 = vunpack.c.l.b16 %v218
    %v251 = vunpack.c.l.b16 %v219
    %v252 = vunpack.c.l.b16 %v220
    %v253 = vunpack.c.l.b16 %v221
    %v254 = vunpack.c.l.b16 %v222
    %v255 = vunpack.c.l.b16 %v223
    %v256 = vunpack.c.l.b16 %v224
    %v257 = vunpack.c.l.b16 %v225
    %v258 = vunpack.c.l.b16 %v226
    %v259 = vunpack.c.l.b16 %v227
    %v260 = vunpack.c.l.b16 %v228
    %v261 = vunpack.c.l.b16 %v229
    %v262 = vpack.c.b16 %v247, %v246
    %v263 = vpack.c.b16 %v249, %v248
    %v264 = vpack.c.b16 %v251, %v250
    %v265 = vpack.c.b16 %v253, %v252
    %v266 = vpack.c.b16 %v255, %v254
    %v267 = vpack.c.b16 %v257, %v256
    %v268 = vpack.c.b16 %v259, %v258
    %v269 = vpack.c.b16 %v261, %v260
    %278 = vmatprep.subr.bf16.mxu0 0
    %279 = vmatpush1.bf16.msra.mxu0 %v269
    %280 = vmatprep.subr.bf16.mxu0 0
    %281 = vmatpush1.bf16.msra.mxu0 %v268
    %282 = vmatprep.subr.bf16.mxu0 0
    %283 = vmatpush1.bf16.msra.mxu0 %v267
    %284 = vmatprep.subr.bf16.mxu0 0
    %285 = vmatpush1.bf16.msra.mxu0 %v266
    %286 = vmatprep.subr.bf16.mxu0 0
    %287 = vmatpush1.bf16.msra.mxu0 %v265
    %288 = vmatprep.subr.bf16.mxu0 0
    %289 = vmatpush1.bf16.msra.mxu0 %v264
    %290 = vmatprep.subr.bf16.mxu0 0
    %291 = vmatpush1.bf16.msra.mxu0 %v263
    %292 = vmatprep.subr.bf16.mxu0 0
    %293 = vmatpush1.bf16.msra.mxu0 %v262
    %294 = vmatprep.subr.bf16.mxu0 0
    %295 = vmatpush2.bf16.msra.mxu0 0
    %296 = vmatprep.subr.bf16.mxu0 0
    %297 = vmatpush2.bf16.msra.mxu0 0
    %298 = vmatprep.subr.bf16.mxu0 0
    %299 = vmatpush2.bf16.msra.mxu0 0
    %300 = vmatprep.subr.bf16.mxu0 0
    %301 = vmatpush2.bf16.msra.mxu0 0
    %302 = vmatprep.subr.bf16.mxu0 0
    %303 = vmatpush2.bf16.msra.mxu0 0
    %304 = vmatprep.subr.bf16.mxu0 0
    %305 = vmatpush2.bf16.msra.mxu0 0
    %306 = vmatprep.subr.bf16.mxu0 0
    %307 = vmatpush2.bf16.msra.mxu0 0
    %308 = vmatprep.subr.bf16.mxu0 0
    %309 = vmatpush2.bf16.msra.mxu0 0
    %310 = vmatprep.mubr.bf16.mxu0 0
    %311 = vmatmul.mubr.bf16.gmra.mxu0 %v212
    %v312 = vpop.f32.mrf.mxu0
    %v313 = vadd.f32 %v82, %v312
    %v314 = vpop.f32.mrf.mxu0
    %v315 = vpop.f32.mrf.mxu0
    %v316 = vadd.f32 %v83, %v315
    %v317 = vpop.f32.mrf.mxu0
    %318 = vmatprep.mubr.bf16.mxu0 0
    %319 = vmatmul.mubr.bf16.gmra.mxu0 %v213
    %v320 = vpop.f32.mrf.mxu0
    %v321 = vadd.f32 %v84, %v320
    %v322 = vpop.f32.mrf.mxu0
    %v323 = vpop.f32.mrf.mxu0
    %v324 = vadd.f32 %v85, %v323
    %v325 = vpop.f32.mrf.mxu0
    %326 = vdwg.mxu0
    %v327 = vlaneseq
    %v328 = vshrl.u32 %v327, 7
    %v329 = vadd.s32 %v328, 8
    %v330 = vadd.s32 %v328, 16
    %v331 = vadd.s32 %v328, 24
    %s332 = smul.u32 0, 2
    %s333 = sld [smem:[#allocation3 + %s332]]
    %v334 = vstv %s333
    %vm335 = vcmp.ge.s32.totalorder %v328, 16
    %vm336 = vcmp.ge.s32.totalorder %v329, 16
    %vm337 = vcmp.ge.s32.totalorder %v330, 16
    %vm338 = vcmp.ge.s32.totalorder %v331, 16
    %v339 = vsub.s32 %v328, 16
    %v340 = vsub.s32 %v329, 16
    %v341 = vsub.s32 %v331, 16
    %v342 = vsel %vm335, %v339, %v328
    %v343 = vsel %vm336, %v340, %v329
    %v344 = vsel %vm337, %v328, %v330
    %v345 = vsel %vm338, %v341, %v331
    %s346 = sadd.s32 %s332, 1
    %s347 = sld [smem:[#allocation3 + %s346]]
    %v348 = vstv %s347
    %v349 = vsel %vm335, %v348, %v334
    %v350 = vsel %vm336, %v348, %v334
    %v351 = vsel %vm337, %v348, %v334
    %v352 = vsel %vm338, %v348, %v334
    %vm353 = vcmp.lt.s32.totalorder %v342, %v349
    %vm354 = vcmp.lt.s32.totalorder %v343, %v350
    %vm355 = vcmp.lt.s32.totalorder %v344, %v351
    %vm356 = vcmp.lt.s32.totalorder %v345, %v352
    %v357 = vsel %vm353, 1, 0
    %v358 = vsel %vm354, 1, 0
    %v359 = vsel %vm355, 1, 0
    %v360 = vsel %vm356, 1, 0
    %v361 = vcvt.s32.f32 %v357
    %v362 = vcvt.s32.f32 %v358
    %v363 = vcvt.s32.f32 %v359
    %v364 = vcvt.s32.f32 %v360
    %v365 = vmul.f32 %v313, %v361
    %v366 = vmul.f32 %v316, %v362
    %v367 = vmul.f32 %v321, %v363
    %v368 = vmul.f32 %v324, %v364
    %v369 = vld [vmem:[#allocation10] sm:$0xff]
    %v370 = vld [vmem:[#allocation10 + $0x8] sm:$0xff]
    %v371 = vlaneseq
    %v372 = vshrl.u32 %v371, 7
    %v373 = vsub.s32 5, %v372
    %v374 = vrot.slane %v369, %v373
    %v375 = vmul.f32 %v374, %v365
    %v376 = vmul.f32 %v374, %v366
    %v377 = vmul.f32 %v374, %v367
    %v378 = vmul.f32 %v374, %v368
    %v379 = vrot.slane %v365, 3
    %v380 = vrot.slane %v366, 3
    %v381 = vrot.slane %v367, 3
    %v382 = vrot.slane %v368, 3
    %vm383 = vcmp.lt.s32.totalorder %v328, 5
    %v384 = vsel %vm383, %v381, %v382
    %v385 = vsel %vm383, %v380, %v381
    %v386 = vsel %vm383, %v379, %v380
    %v387 = vsel %vm383, %v382, %v379
    %vm388 = vcmp.ge.s32.totalorder %v342, 5
    %vm389 = vcmp.ge.s32.totalorder %v343, 5
    %vm390 = vcmp.ge.s32.totalorder %v344, 5
    %vm391 = vcmp.ge.s32.totalorder %v345, 5
    %v392 = vsel %vm388, 1, 0
    %v393 = vsel %vm389, 1, 0
    %v394 = vsel %vm390, 1, 0
    %v395 = vsel %vm391, 1, 0
    %v396 = vcvt.s32.f32 %v392
    %v397 = vcvt.s32.f32 %v393
    %v398 = vcvt.s32.f32 %v394
    %v399 = vcvt.s32.f32 %v395
    %v400 = vlaneseq
    %v401 = vshrl.u32 %v400, 7
    %v402 = vsub.s32 0, %v401
    %v403 = vrot.slane %v369, %v402
    %v404 = vmul.f32 %v403, %v387
    %v405 = vmul.f32 %v403, %v386
    %v406 = vmul.f32 %v403, %v385
    %v407 = vmul.f32 %v403, %v384
    %v408 = vmul.f32 %v404, %v396
    %v409 = vmul.f32 %v405, %v397
    %v410 = vmul.f32 %v406, %v398
    %v411 = vmul.f32 %v407, %v399
    %v412 = vadd.f32 %v375, %v408
    %v413 = vadd.f32 %v376, %v409
    %v414 = vadd.f32 %v377, %v410
    %v415 = vadd.f32 %v378, %v411
    %v416 = vrot.slane %v365, 4
    %v417 = vrot.slane %v366, 4
    %v418 = vrot.slane %v367, 4
    %v419 = vrot.slane %v368, 4
    %vm420 = vcmp.lt.s32.totalorder %v328, 4
    %v421 = vsel %vm420, %v418, %v419
    %v422 = vsel %vm420, %v417, %v418
    %v423 = vsel %vm420, %v416, %v417
    %v424 = vsel %vm420, %v419, %v416
    %vm425 = vcmp.ge.s32.totalorder %v342, 4
    %vm426 = vcmp.ge.s32.totalorder %v343, 4
    %vm427 = vcmp.ge.s32.totalorder %v344, 4
    %vm428 = vcmp.ge.s32.totalorder %v345, 4
    %v429 = vsel %vm425, 1, 0
    %v430 = vsel %vm426, 1, 0
    %v431 = vsel %vm427, 1, 0
    %v432 = vsel %vm428, 1, 0
    %v433 = vcvt.s32.f32 %v429
    %v434 = vcvt.s32.f32 %v430
    %v435 = vcvt.s32.f32 %v431
    %v436 = vcvt.s32.f32 %v432
    %v437 = vlaneseq
    %v438 = vshrl.u32 %v437, 7
    %v439 = vsub.s32 1, %v438
    %v440 = vrot.slane %v369, %v439
    %v441 = vmul.f32 %v440, %v424
    %v442 = vmul.f32 %v440, %v423
    %v443 = vmul.f32 %v440, %v422
    %v444 = vmul.f32 %v440, %v421
    %v445 = vmul.f32 %v441, %v433
    %v446 = vmul.f32 %v442, %v434
    %v447 = vmul.f32 %v443, %v435
    %v448 = vmul.f32 %v444, %v436
    %v449 = vadd.f32 %v412, %v445
    %v450 = vadd.f32 %v413, %v446
    %v451 = vadd.f32 %v414, %v447
    %v452 = vadd.f32 %v415, %v448
    %v453 = vrot.slane %v365, 5
    %v454 = vrot.slane %v366, 5
    %v455 = vrot.slane %v367, 5
    %v456 = vrot.slane %v368, 5
    %vm457 = vcmp.lt.s32.totalorder %v328, 3
    %v458 = vsel %vm457, %v455, %v456
    %v459 = vsel %vm457, %v454, %v455
    %v460 = vsel %vm457, %v453, %v454
    %v461 = vsel %vm457, %v456, %v453
    %vm462 = vcmp.ge.s32.totalorder %v342, 3
    %vm463 = vcmp.ge.s32.totalorder %v343, 3
    %vm464 = vcmp.ge.s32.totalorder %v344, 3
    %vm465 = vcmp.ge.s32.totalorder %v345, 3
    %v466 = vsel %vm462, 1, 0
    %v467 = vsel %vm463, 1, 0
    %v468 = vsel %vm464, 1, 0
    %v469 = vsel %vm465, 1, 0
    %v470 = vcvt.s32.f32 %v466
    %v471 = vcvt.s32.f32 %v467
    %v472 = vcvt.s32.f32 %v468
    %v473 = vcvt.s32.f32 %v469
    %v474 = vlaneseq
    %v475 = vshrl.u32 %v474, 7
    %v476 = vsub.s32 2, %v475
    %v477 = vrot.slane %v369, %v476
    %v478 = vmul.f32 %v477, %v461
    %v479 = vmul.f32 %v477, %v460
    %v480 = vmul.f32 %v477, %v459
    %v481 = vmul.f32 %v477, %v458
    %v482 = vmul.f32 %v478, %v470
    %v483 = vmul.f32 %v479, %v471
    %v484 = vmul.f32 %v480, %v472
    %v485 = vmul.f32 %v481, %v473
    %v486 = vadd.f32 %v449, %v482
    %v487 = vadd.f32 %v450, %v483
    %v488 = vadd.f32 %v451, %v484
    %v489 = vadd.f32 %v452, %v485
    %v490 = vrot.slane %v365, 6
    %v491 = vrot.slane %v366, 6
    %v492 = vrot.slane %v367, 6
    %v493 = vrot.slane %v368, 6
    %vm494 = vcmp.lt.s32.totalorder %v328, 2
    %v495 = vsel %vm494, %v492, %v493
    %v496 = vsel %vm494, %v491, %v492
    %v497 = vsel %vm494, %v490, %v491
    %v498 = vsel %vm494, %v493, %v490
    %vm499 = vcmp.ge.s32.totalorder %v342, 2
    %vm500 = vcmp.ge.s32.totalorder %v343, 2
    %vm501 = vcmp.ge.s32.totalorder %v344, 2
    %vm502 = vcmp.ge.s32.totalorder %v345, 2
    %v503 = vsel %vm499, 1, 0
    %v504 = vsel %vm500, 1, 0
    %v505 = vsel %vm501, 1, 0
    %v506 = vsel %vm502, 1, 0
    %v507 = vcvt.s32.f32 %v503
    %v508 = vcvt.s32.f32 %v504
    %v509 = vcvt.s32.f32 %v505
    %v510 = vcvt.s32.f32 %v506
    %v511 = vlaneseq
    %v512 = vshrl.u32 %v511, 7
    %v513 = vsub.s32 3, %v512
    %v514 = vrot.slane %v369, %v513
    %v515 = vmul.f32 %v514, %v498
    %v516 = vmul.f32 %v514, %v497
    %v517 = vmul.f32 %v514, %v496
    %v518 = vmul.f32 %v514, %v495
    %v519 = vmul.f32 %v515, %v507
    %v520 = vmul.f32 %v516, %v508
    %v521 = vmul.f32 %v517, %v509
    %v522 = vmul.f32 %v518, %v510
    %v523 = vadd.f32 %v486, %v519
    %v524 = vadd.f32 %v487, %v520
    %v525 = vadd.f32 %v488, %v521
    %v526 = vadd.f32 %v489, %v522
    %v527 = vrot.slane %v365, 7
    %v528 = vrot.slane %v366, 7
    %v529 = vrot.slane %v367, 7
    %v530 = vrot.slane %v368, 7
    %vm531 = vcmp.lt.s32.totalorder %v328, 1
    %v532 = vsel %vm531, %v529, %v530
    %v533 = vsel %vm531, %v528, %v529
    %v534 = vsel %vm531, %v527, %v528
    %v535 = vsel %vm531, %v530, %v527
    %vm536 = vcmp.ge.s32.totalorder %v342, 1
    %vm537 = vcmp.ge.s32.totalorder %v343, 1
    %vm538 = vcmp.ge.s32.totalorder %v344, 1
    %vm539 = vcmp.ge.s32.totalorder %v345, 1
    %v540 = vsel %vm536, 1, 0
    %v541 = vsel %vm537, 1, 0
    %v542 = vsel %vm538, 1, 0
    %v543 = vsel %vm539, 1, 0
    %v544 = vcvt.s32.f32 %v540
    %v545 = vcvt.s32.f32 %v541
    %v546 = vcvt.s32.f32 %v542
    %v547 = vcvt.s32.f32 %v543
    %v548 = vlaneseq
    %v549 = vshrl.u32 %v548, 7
    %v550 = vsub.s32 4, %v549
    %v551 = vrot.slane %v369, %v550
    %v552 = vmul.f32 %v551, %v535
    %v553 = vmul.f32 %v551, %v534
    %v554 = vmul.f32 %v551, %v533
    %v555 = vmul.f32 %v551, %v532
    %v556 = vmul.f32 %v552, %v544
    %v557 = vmul.f32 %v553, %v545
    %v558 = vmul.f32 %v554, %v546
    %v559 = vmul.f32 %v555, %v547
    %v560 = vadd.f32 %v523, %v556
    %v561 = vadd.f32 %v524, %v557
    %v562 = vadd.f32 %v525, %v558
    %v563 = vadd.f32 %v526, %v559
    %v564 = vrot.slane %v365, 1
    %v565 = vrot.slane %v366, 1
    %v566 = vrot.slane %v367, 1
    %v567 = vrot.slane %v368, 1
    %vm568 = vcmp.lt.s32.totalorder %v328, 7
    %v569 = vsel %vm568, %v566, %v567
    %v570 = vsel %vm568, %v565, %v566
    %v571 = vsel %vm568, %v564, %v565
    %v572 = vsel %vm568, %v567, %v564
    %vm573 = vcmp.lt.s32.totalorder %v342, 15
    %vm574 = vcmp.lt.s32.totalorder %v343, 15
    %vm575 = vcmp.lt.s32.totalorder %v344, 15
    %vm576 = vcmp.lt.s32.totalorder %v345, 15
    %v577 = vsel %vm573, 1, 0
    %v578 = vsel %vm574, 1, 0
    %v579 = vsel %vm575, 1, 0
    %v580 = vsel %vm576, 1, 0
    %v581 = vcvt.s32.f32 %v577
    %v582 = vcvt.s32.f32 %v578
    %v583 = vcvt.s32.f32 %v579
    %v584 = vcvt.s32.f32 %v580
    %v585 = vlaneseq
    %v586 = vshrl.u32 %v585, 7
    %v587 = vsub.s32 6, %v586
    %v588 = vrot.slane %v369, %v587
    %v589 = vmul.f32 %v588, %v571
    %v590 = vmul.f32 %v588, %v570
    %v591 = vmul.f32 %v588, %v569
    %v592 = vmul.f32 %v588, %v572
    %v593 = vmul.f32 %v589, %v581
    %v594 = vmul.f32 %v590, %v582
    %v595 = vmul.f32 %v591, %v583
    %v596 = vmul.f32 %v592, %v584
    %v597 = vadd.f32 %v560, %v593
    %v598 = vadd.f32 %v561, %v594
    %v599 = vadd.f32 %v562, %v595
    %v600 = vadd.f32 %v563, %v596
    %v601 = vrot.slane %v365, 2
    %v602 = vrot.slane %v366, 2
    %v603 = vrot.slane %v367, 2
    %v604 = vrot.slane %v368, 2
    %vm605 = vcmp.lt.s32.totalorder %v328, 6
    %v606 = vsel %vm605, %v603, %v604
    %v607 = vsel %vm605, %v602, %v603
    %v608 = vsel %vm605, %v601, %v602
    %v609 = vsel %vm605, %v604, %v601
    %vm610 = vcmp.lt.s32.totalorder %v342, 14
    %vm611 = vcmp.lt.s32.totalorder %v343, 14
    %vm612 = vcmp.lt.s32.totalorder %v344, 14
    %vm613 = vcmp.lt.s32.totalorder %v345, 14
    %v614 = vsel %vm610, 1, 0
    %v615 = vsel %vm611, 1, 0
    %v616 = vsel %vm612, 1, 0
    %v617 = vsel %vm613, 1, 0
    %v618 = vcvt.s32.f32 %v614
    %v619 = vcvt.s32.f32 %v615
    %v620 = vcvt.s32.f32 %v616
    %v621 = vcvt.s32.f32 %v617
    %v622 = vlaneseq
    %v623 = vshrl.u32 %v622, 7
    %v624 = vsub.s32 7, %v623
    %v625 = vrot.slane %v369, %v624
    %v626 = vmul.f32 %v625, %v608
    %v627 = vmul.f32 %v625, %v607
    %v628 = vmul.f32 %v625, %v606
    %v629 = vmul.f32 %v625, %v609
    %v630 = vmul.f32 %v626, %v618
    %v631 = vmul.f32 %v627, %v619
    %v632 = vmul.f32 %v628, %v620
    %v633 = vmul.f32 %v629, %v621
    %v634 = vadd.f32 %v597, %v630
    %v635 = vadd.f32 %v598, %v631
    %v636 = vadd.f32 %v599, %v632
    %v637 = vadd.f32 %v600, %v633
    %vm638 = vcmp.lt.s32.totalorder %v342, 13
    %vm639 = vcmp.lt.s32.totalorder %v343, 13
    %vm640 = vcmp.lt.s32.totalorder %v344, 13
    %vm641 = vcmp.lt.s32.totalorder %v345, 13
    %v642 = vsel %vm638, 1, 0
    %v643 = vsel %vm639, 1, 0
    %v644 = vsel %vm640, 1, 0
    %v645 = vsel %vm641, 1, 0
    %v646 = vcvt.s32.f32 %v642
    %v647 = vcvt.s32.f32 %v643
    %v648 = vcvt.s32.f32 %v644
    %v649 = vcvt.s32.f32 %v645
    %v650 = vlaneseq
    %v651 = vshrl.u32 %v650, 7
    %v652 = vsub.s32 0, %v651
    %v653 = vrot.slane %v370, %v652
    %v654 = vmul.f32 %v653, %v386
    %v655 = vmul.f32 %v653, %v385
    %v656 = vmul.f32 %v653, %v384
    %v657 = vmul.f32 %v653, %v387
    %v658 = vmul.f32 %v654, %v646
    %v659 = vmul.f32 %v655, %v647
    %v660 = vmul.f32 %v656, %v648
    %v661 = vmul.f32 %v657, %v649
    %v662 = vadd.f32 %v634, %v658
    %v663 = vadd.f32 %v635, %v659
    %v664 = vadd.f32 %v636, %v660
    %v665 = vadd.f32 %v637, %v661
    %vm666 = vcmp.lt.s32.totalorder %v342, 12
    %vm667 = vcmp.lt.s32.totalorder %v343, 12
    %vm668 = vcmp.lt.s32.totalorder %v344, 12
    %vm669 = vcmp.lt.s32.totalorder %v345, 12
    %v670 = vsel %vm666, 1, 0
    %v671 = vsel %vm667, 1, 0
    %v672 = vsel %vm668, 1, 0
    %v673 = vsel %vm669, 1, 0
    %v674 = vcvt.s32.f32 %v670
    %v675 = vcvt.s32.f32 %v671
    %v676 = vcvt.s32.f32 %v672
    %v677 = vcvt.s32.f32 %v673
    %v678 = vlaneseq
    %v679 = vshrl.u32 %v678, 7
    %v680 = vsub.s32 1, %v679
    %v681 = vrot.slane %v370, %v680
    %v682 = vmul.f32 %v681, %v423
    %v683 = vmul.f32 %v681, %v422
    %v684 = vmul.f32 %v681, %v421
    %v685 = vmul.f32 %v681, %v424
    %v686 = vmul.f32 %v682, %v674
    %v687 = vmul.f32 %v683, %v675
    %v688 = vmul.f32 %v684, %v676
    %v689 = vmul.f32 %v685, %v677
    %v690 = vadd.f32 %v662, %v686
    %v691 = vadd.f32 %v663, %v687
    %v692 = vadd.f32 %v664, %v688
    %v693 = vadd.f32 %v665, %v689
    %vm694 = vcmp.lt.s32.totalorder %v342, 11
    %vm695 = vcmp.lt.s32.totalorder %v343, 11
    %vm696 = vcmp.lt.s32.totalorder %v344, 11
    %vm697 = vcmp.lt.s32.totalorder %v345, 11
    %v698 = vsel %vm694, 1, 0
    %v699 = vsel %vm695, 1, 0
    %v700 = vsel %vm696, 1, 0
    %v701 = vsel %vm697, 1, 0
    %v702 = vcvt.s32.f32 %v698
    %v703 = vcvt.s32.f32 %v699
    %v704 = vcvt.s32.f32 %v700
    %v705 = vcvt.s32.f32 %v701
    %v706 = vlaneseq
    %v707 = vshrl.u32 %v706, 7
    %v708 = vsub.s32 2, %v707
    %v709 = vrot.slane %v370, %v708
    %v710 = vmul.f32 %v709, %v460
    %v711 = vmul.f32 %v709, %v459
    %v712 = vmul.f32 %v709, %v458
    %v713 = vmul.f32 %v709, %v461
    %v714 = vmul.f32 %v710, %v702
    %v715 = vmul.f32 %v711, %v703
    %v716 = vmul.f32 %v712, %v704
    %v717 = vmul.f32 %v713, %v705
    %v718 = vadd.f32 %v690, %v714
    %v719 = vadd.f32 %v691, %v715
    %v720 = vadd.f32 %v692, %v716
    %v721 = vadd.f32 %v693, %v717
    %722 = vst [vmem:[#allocation12] sm:$0xff] %v718
    %723 = vst [vmem:[#allocation12 + $0x8] sm:$0xff] %v719
    %724 = vst [vmem:[#allocation12 + $0x10] sm:$0xff] %v720
    %725 = vst [vmem:[#allocation12 + $0x18] sm:$0xff] %v721
    // Predicated region
    $region38: #{tpu_custom_call.1} parent=1 // pred_check
      _
    $region39: #{tpu_custom_call.1} parent=1 // pred_check_branch
      %727 = sbr.rel (0) target = $region41
    $region40: #{tpu_custom_call.1} parent=1 // pred_region
      %s729 = ssub.s32 512, 512
      %730 = vsyncadd [#allocation6], %s729
      %s731 = sshll.u32 [#allocation12], 4
      %s732 = int_to_ptr.vmem [resolvable:$true] %s731
      %737 = dma.vmem_to_hbm [thread:$0]  %s732, 512, %s6, [#allocation6], 128, 128, 8
    $region41: #{tpu_custom_call.1} parent=1 // pred_fallthru
      _
    // Predicated region
    $region42: #{tpu_custom_call.1} parent=1 // pred_check
      _
    $region43: #{tpu_custom_call.1} parent=1 // pred_check_branch
      %739 = sbr.rel (0) target = $region45
    $region44: #{tpu_custom_call.1} parent=1 // pred_region
      %740 = dma.done [#allocation6], 512
    $region45: #{tpu_custom_call.1} parent=1 // pred_fallthru
      _
    %741 = vsyncpa [#allocation5], 1
    %742 = vsyncpa [#allocation8], 1
    %743 = vsyncpa [#allocation11], 1
    %744 = vsyncpa [#allocation6], 1

</llo_original>
